<compile_context>
chip_gen: v6e
topology: v6e:2x2x1
jax: 0.10.0
libtpu: 0.0.40
codegen_flags: <defaults>
</compile_context>

<pallas_src>
import functools

import jax
import jax.numpy as jnp
from jax.experimental import pallas as pl
from jax.experimental.pallas import tpu as pltpu


def _round_up(x, m):
    return ((x + m - 1) // m) * m


def _ffn_kernel(*refs, eps, inv_h, has_bias):
    """One (token tile, intermediate slab) step of RMSNorm + SwiGLU FFN."""
    if has_bias:
        (x_ref, nw_ref, wg_ref, wu_ref, wd_ref, gb_ref, ub_ref, db_ref,
         o_ref, xn_ref, acc_ref) = refs
    else:
        x_ref, nw_ref, wg_ref, wu_ref, wd_ref, o_ref, xn_ref, acc_ref = refs
        gb_ref = ub_ref = db_ref = None

    k = pl.program_id(1)

    # Token-tile prologue (reduction axis is last in the grid, so k wraps back
    # to 0 exactly when the token tile advances): RMSNorm in f32 with the TRUE
    # hidden-size divisor (padded hidden lanes are zero), fold in the norm
    # weight, stash x_norm in scratch, and zero the f32 accumulator.
    @pl.when(k == 0)
    def _():
        x = x_ref[...].astype(jnp.float32)                                # (TM, Hp)
        var = jnp.sum(x * x, axis=-1, keepdims=True) * inv_h              # (TM, 1)
        xn_ref[...] = (x * jax.lax.rsqrt(var + eps)
                       * nw_ref[...].astype(jnp.float32)).astype(xn_ref.dtype)
        acc_ref[...] = jnp.zeros_like(acc_ref)

    xn = xn_ref[...]                                                      # (TM, Hp)

    # Two MXU matmuls for this intermediate slab (kept separate so no wide f32
    # buffer is materialized and sliced).
    gate = jnp.dot(xn, wg_ref[...], preferred_element_type=jnp.float32)   # (TM, TI)
    up = jnp.dot(xn, wu_ref[...], preferred_element_type=jnp.float32)     # (TM, TI)
    if has_bias:
        gate = gate + gb_ref[...].astype(jnp.float32)
        up = up + ub_ref[...].astype(jnp.float32)

    # SiLU(gate) * up  (sigmoid lowers to the EUP slot -> nearly free).
    h = (gate * jax.nn.sigmoid(gate)) * up                                # (TM, TI) f32

    # Partial down projection for this slab, f32 accumulation on the MXU.
    acc_ref[...] += jnp.dot(h.astype(wd_ref.dtype), wd_ref[...],
                            preferred_element_type=jnp.float32)

    @pl.when(k == pl.num_programs(1) - 1)
    def _():
        out = acc_ref[...]
        if has_bias:
            out = out + db_ref[...].astype(jnp.float32)
        o_ref[...] = out.astype(o_ref.dtype)


def llama4_ffn(hidden_states, norm_weight, gate_w, up_w, down_w,
               gate_b=None, up_b=None, down_b=None, *,
               eps=1e-6, block_tokens=256, block_inner=512):
    """hidden_states: (B, S, H).  gate_w/up_w: (H, I), down_w: (I, H) — already
    transposed to (in, out) relative to PyTorch nn.Linear storage.  Optional
    biases: gate_b/up_b: (I,), down_b: (H,)."""
    B, S, H = hidden_states.shape
    I = gate_w.shape[1]
    T = B * S
    dtype = hidden_states.dtype
    dt_bytes = jnp.dtype(dtype).itemsize
    has_bias = gate_b is not None

    # Lane-dense padding: hidden/intermediate dims -> multiples of 128.
    Hp = _round_up(H, 128)
    ti = max(128, _round_up(min(block_inner, I), 128))   # intermediate slab width
    Ip = _round_up(I, ti)
    n_k = Ip // ti

    # Token tile: aligned to the dtype's sublane packing (8 f32 / 16 bf16 / 32 i8).
    row_align = max(8, 32 // dt_bytes)
    tm = min(block_tokens, _round_up(T, row_align))
    tm = max(row_align, _round_up(tm, row_align))
    Tp = _round_up(T, tm)
    n_t = Tp // tm

    # Zero-pad (padded rows/cols contribute exactly zero to every result).
    x2d = jnp.pad(hidden_states.reshape(T, H), ((0, Tp - T), (0, Hp - H)))
    nw2d = jnp.pad(norm_weight.reshape(1, H), ((0, 0), (0, Hp - H)))
    wg = jnp.pad(gate_w, ((0, Hp - H), (0, Ip - I)))
    wu = jnp.pad(up_w, ((0, Hp - H), (0, Ip - I)))
    wd = jnp.pad(down_w, ((0, Ip - I), (0, Hp - H)))

    in_specs = [
        pl.BlockSpec((tm, Hp), lambda i, k: (i, 0)),     # activation tile
        pl.BlockSpec((1, Hp), lambda i, k: (0, 0)),      # rmsnorm weight
        pl.BlockSpec((Hp, ti), lambda i, k: (0, k)),     # gate weight slab (streamed)
        pl.BlockSpec((Hp, ti), lambda i, k: (0, k)),     # up weight slab (streamed)
        pl.BlockSpec((ti, Hp), lambda i, k: (k, 0)),     # down weight slab (streamed)
    ]
    inputs = [x2d, nw2d, wg, wu, wd]
    if has_bias:
        gb = jnp.pad(gate_b.reshape(1, I), ((0, 0), (0, Ip - I)))
        ub = jnp.pad(up_b.reshape(1, I), ((0, 0), (0, Ip - I)))
        db = jnp.pad(down_b.reshape(1, H), ((0, 0), (0, Hp - H)))
        in_specs += [
            pl.BlockSpec((1, ti), lambda i, k: (0, k)),
            pl.BlockSpec((1, ti), lambda i, k: (0, k)),
            pl.BlockSpec((1, Hp), lambda i, k: (0, 0)),
        ]
        inputs += [gb, ub, db]

    kernel = functools.partial(_ffn_kernel, eps=eps, inv_h=1.0 / H,
                               has_bias=has_bias)

    # Honest VMEM estimate (inputs are double-buffered by the pipeline).
    vmem_bytes = (
        2 * tm * Hp * dt_bytes          # x tile (double-buffered)
        + 2 * tm * Hp * dt_bytes        # out tile (double-buffered)
        + 2 * Hp * dt_bytes             # norm weight
        + 2 * 3 * Hp * ti * dt_bytes    # gate/up/down weight slabs (double-buffered)
        + tm * Hp * dt_bytes            # x_norm scratch
        + tm * Hp * 4                   # f32 accumulator scratch
        + 3 * tm * ti * 4               # live f32 intermediates (gate/up/h)
        + (2 << 20)                     # slack
    )
    if has_bias:
        vmem_bytes += 2 * (2 * ti + Hp) * dt_bytes

    # Clamp the scoped limit to ~0.85x of this chip's physical VMEM
    # (~54 MiB on v7x, ~108 MiB on v5e/v6e).
    try:
        vmem_cap = pltpu.get_tpu_info().vmem_capacity_bytes
    except Exception:  # not on a TPU / older API — assume the smallest (v7x)
        vmem_cap = 64 << 20
    vmem_limit = int(min(max(vmem_bytes, 32 << 20), int(0.85 * vmem_cap)))

    bytes_acc = (2 * T * H + 3 * H * I + H) * dt_bytes
    if has_bias:
        bytes_acc += (2 * I + H) * dt_bytes
    cost = pl.CostEstimate(
        flops=6 * T * H * I,            # gate (2THI) + up (2THI) + down (2THI)
        transcendentals=T * I,          # sigmoid
        bytes_accessed=bytes_acc,
    )

    out2d = pl.pallas_call(
        kernel,
        out_shape=jax.ShapeDtypeStruct((Tp, Hp), dtype),
        grid_spec=pltpu.PrefetchScalarGridSpec(
            num_scalar_prefetch=0,
            grid=(n_t, n_k),
            in_specs=in_specs,
            out_specs=pl.BlockSpec((tm, Hp), lambda i, k: (i, 0)),
            scratch_shapes=[
                pltpu.VMEM((tm, Hp), dtype),         # x_norm, reused across k
                pltpu.VMEM((tm, Hp), jnp.float32),   # down-proj accumulator
            ],
        ),
        compiler_params=pltpu.CompilerParams(
            dimension_semantics=("parallel", "arbitrary"),
            vmem_limit_bytes=vmem_limit),
        cost_estimate=cost,
    )(*inputs)

    return out2d[:T, :H].reshape(B, S, H)


def _reference(x, nw, gw, uw, dw, gb=None, ub=None, db=None, eps=1e-6):
    xf = x.astype(jnp.float32)
    var = jnp.mean(xf * xf, axis=-1, keepdims=True)
    xn = (nw * (xf * jax.lax.rsqrt(var + eps))).astype(x.dtype)
    gate = xn @ gw
    up = xn @ uw
    if gb is not None:
        gate = gate + gb
        up = up + ub
    down = ((gate * jax.nn.sigmoid(gate)) * up) @ dw
    if db is not None:
        down = down + db
    return down


if __name__ == "__main__":
    # Small config: batch=2, seq=8, hidden=32, intermediate=64, silu.
    B, S, H, I = 2, 8, 32, 64
    eps = 1e-6

    key = jax.random.PRNGKey(0)
    kx, kg, ku, kd, kb1, kb2, kb3 = jax.random.split(key, 7)

    x = jax.random.normal(kx, (B, S, H), dtype=jnp.float32)

    # Deterministic parameter init (synthetic). Stored directly as (in, out).
    norm_weight = jnp.ones((H,), dtype=jnp.float32)
    gate_w = jax.random.normal(kg, (H, I), dtype=jnp.float32) * (1.0 / H ** 0.5)
    up_w = jax.random.normal(ku, (H, I), dtype=jnp.float32) * (1.0 / H ** 0.5)
    down_w = jax.random.normal(kd, (I, H), dtype=jnp.float32) * (1.0 / I ** 0.5)

    # --- ffn_bias = False (matches the reference config) ---
    out = llama4_ffn(x, norm_weight, gate_w, up_w, down_w, eps=eps)
    out = jax.block_until_ready(out)
    ref = _reference(x, norm_weight, gate_w, up_w, down_w, eps=eps)
    assert out.shape == (B, S, H)
    assert jnp.allclose(out, ref, atol=1e-4, rtol=1e-4), \
        float(jnp.max(jnp.abs(out - ref)))

    # --- ffn_bias = True path ---
    gate_b = jax.random.normal(kb1, (I,), dtype=jnp.float32) * 0.1
    up_b = jax.random.normal(kb2, (I,), dtype=jnp.float32) * 0.1
    down_b = jax.random.normal(kb3, (H,), dtype=jnp.float32) * 0.1
    out_b = llama4_ffn(x, norm_weight, gate_w, up_w, down_w,
                       gate_b, up_b, down_b, eps=eps)
    out_b = jax.block_until_ready(out_b)
    ref_b = _reference(x, norm_weight, gate_w, up_w, down_w,
                       gate_b, up_b, down_b, eps=eps)
    assert jnp.allclose(out_b, ref_b, atol=1e-4, rtol=1e-4), \
        float(jnp.max(jnp.abs(out_b - ref_b)))

    print("KERNEL_OK")
</pallas_src>

<mosaic_0001>
module attributes {stable_mosaic.version = 11 : i64} {
  func.func @_ffn_kernel(%arg0: i32, %arg1: i32, %arg2: memref<16x128xf32, #tpu.memory_space<vmem>>, %arg3: memref<1x128xf32, #tpu.memory_space<vmem>>, %arg4: memref<128x128xf32, #tpu.memory_space<vmem>>, %arg5: memref<128x128xf32, #tpu.memory_space<vmem>>, %arg6: memref<128x128xf32, #tpu.memory_space<vmem>>, %arg7: memref<16x128xf32, #tpu.memory_space<vmem>>, %arg8: memref<16x128xf32, #tpu.memory_space<vmem>>, %arg9: memref<16x128xf32, #tpu.memory_space<vmem>>) attributes {dimension_semantics = [#tpu.dimension_semantics<parallel>, #tpu.dimension_semantics<arbitrary>], iteration_bounds = array<i64: 1, 1>, scalar_prefetch = 0 : i64, scratch_operands = 2 : i64, tpu.core_type = #tpu.core_type<tc>, window_params = [{transform_indices = @transform_0, window_bounds = array<i64: 16, 128>}, {pipeline_mode = #tpu.pipeline_mode<synchronous>, transform_indices = @transform_1, window_bounds = array<i64: 1, 128>}, {transform_indices = @transform_2, window_bounds = array<i64: 128, 128>}, {transform_indices = @transform_3, window_bounds = array<i64: 128, 128>}, {transform_indices = @transform_4, window_bounds = array<i64: 128, 128>}, {transform_indices = @transform_5, window_bounds = array<i64: 16, 128>}]} {
    %c0_i32 = arith.constant 0 : i32
    %0 = arith.cmpi eq, %arg1, %c0_i32 : i32
    %1 = arith.extui %0 : i1 to i32
    %c0_i32_0 = arith.constant 0 : i32
    %2 = arith.cmpi ne, %1, %c0_i32_0 : i32
    scf.if %2 {
      %c0_17 = arith.constant 0 : index
      %c0_18 = arith.constant 0 : index
      %23 = vector.load %arg2[%c0_17, %c0_18] : memref<16x128xf32, #tpu.memory_space<vmem>>, vector<16x128xf32>
      %24 = arith.mulf %23, %23 : vector<16x128xf32>
      %cst_19 = arith.constant dense<0.000000e+00> : vector<16xf32>
      %25 = vector.multi_reduction <add>, %24, %cst_19 [1] : vector<16x128xf32> to vector<16xf32>
      %26 = vector.shape_cast %25 : vector<16xf32> to vector<16x1xf32>
      %cst_20 = arith.constant 3.125000e-02 : f32
      %27 = vector.broadcast %cst_20 : f32 to vector<16x1xf32>
      %28 = arith.mulf %26, %27 : vector<16x1xf32>
      %cst_21 = arith.constant 9.99999997E-7 : f32
      %29 = vector.broadcast %cst_21 : f32 to vector<16x1xf32>
      %30 = arith.addf %28, %29 : vector<16x1xf32>
      %31 = math.rsqrt %30 : vector<16x1xf32>
      %32 = vector.broadcast %31 : vector<16x1xf32> to vector<16x128xf32>
      %33 = arith.mulf %23, %32 : vector<16x128xf32>
      %c0_22 = arith.constant 0 : index
      %c0_23 = arith.constant 0 : index
      %34 = vector.load %arg3[%c0_22, %c0_23] : memref<1x128xf32, #tpu.memory_space<vmem>>, vector<1x128xf32>
      %35 = vector.broadcast %34 : vector<1x128xf32> to vector<16x128xf32>
      %36 = arith.mulf %33, %35 : vector<16x128xf32>
      %c0_24 = arith.constant 0 : index
      %c0_25 = arith.constant 0 : index
      %37 = vector.load %arg8[%c0_24, %c0_25] : memref<16x128xf32, #tpu.memory_space<vmem>>, vector<16x128xf32>
      tpu.vector_store %arg8[%c0_24, %c0_25], %36 {strides = array<i32>} : memref<16x128xf32, #tpu.memory_space<vmem>>, vector<16x128xf32>,
      %cst_26 = arith.constant 0.000000e+00 : f32
      %38 = vector.broadcast %cst_26 : f32 to vector<16x128xf32>
      %c0_27 = arith.constant 0 : index
      %c0_28 = arith.constant 0 : index
      %39 = vector.load %arg9[%c0_27, %c0_28] : memref<16x128xf32, #tpu.memory_space<vmem>>, vector<16x128xf32>
      tpu.vector_store %arg9[%c0_27, %c0_28], %38 {strides = array<i32>} : memref<16x128xf32, #tpu.memory_space<vmem>>, vector<16x128xf32>,
    } else {
    }
    %c0 = arith.constant 0 : index
    %c0_1 = arith.constant 0 : index
    %3 = vector.load %arg8[%c0, %c0_1] : memref<16x128xf32, #tpu.memory_space<vmem>>, vector<16x128xf32>
    %c0_2 = arith.constant 0 : index
    %c0_3 = arith.constant 0 : index
    %4 = vector.load %arg4[%c0_2, %c0_3] : memref<128x128xf32, #tpu.memory_space<vmem>>, vector<128x128xf32>
    %cst = arith.constant dense<0.000000e+00> : vector<16x128xf32>
    %5 = tpu.matmul %3, %4, %cst {dimension_numbers = #tpu.dot_dimension_numbers<[1], [0], [0], [1], [0, 0, 1, 1], [], []>} : vector<16x128xf32>, vector<128x128xf32>, vector<16x128xf32> -> vector<16x128xf32>
    %c0_4 = arith.constant 0 : index
    %c0_5 = arith.constant 0 : index
    %6 = vector.load %arg5[%c0_4, %c0_5] : memref<128x128xf32, #tpu.memory_space<vmem>>, vector<128x128xf32>
    %cst_6 = arith.constant dense<0.000000e+00> : vector<16x128xf32>
    %7 = tpu.matmul %3, %6, %cst_6 {dimension_numbers = #tpu.dot_dimension_numbers<[1], [0], [0], [1], [0, 0, 1, 1], [], []>} : vector<16x128xf32>, vector<128x128xf32>, vector<16x128xf32> -> vector<16x128xf32>
    %8 = arith.negf %5 : vector<16x128xf32>
    %9 = math.exp %8 : vector<16x128xf32>
    %cst_7 = arith.constant 1.000000e+00 : f32
    %10 = vector.broadcast %cst_7 : f32 to vector<16x128xf32>
    %11 = arith.addf %10, %9 : vector<16x128xf32>
    %12 = arith.divf %10, %11 : vector<16x128xf32>
    %13 = arith.mulf %5, %12 : vector<16x128xf32>
    %14 = arith.mulf %13, %7 : vector<16x128xf32>
    %c0_8 = arith.constant 0 : index
    %c0_9 = arith.constant 0 : index
    %15 = vector.load %arg9[%c0_8, %c0_9] : memref<16x128xf32, #tpu.memory_space<vmem>>, vector<16x128xf32>
    %c0_10 = arith.constant 0 : index
    %c0_11 = arith.constant 0 : index
    %16 = vector.load %arg6[%c0_10, %c0_11] : memref<128x128xf32, #tpu.memory_space<vmem>>, vector<128x128xf32>
    %cst_12 = arith.constant dense<0.000000e+00> : vector<16x128xf32>
    %17 = tpu.matmul %14, %16, %cst_12 {dimension_numbers = #tpu.dot_dimension_numbers<[1], [0], [0], [1], [0, 0, 1, 1], [], []>} : vector<16x128xf32>, vector<128x128xf32>, vector<16x128xf32> -> vector<16x128xf32>
    %18 = arith.addf %15, %17 : vector<16x128xf32>
    %c0_13 = arith.constant 0 : index
    %c0_14 = arith.constant 0 : index
    %19 = vector.load %arg9[%c0_13, %c0_14] : memref<16x128xf32, #tpu.memory_space<vmem>>, vector<16x128xf32>
    tpu.vector_store %arg9[%c0_13, %c0_14], %18 {strides = array<i32>} : memref<16x128xf32, #tpu.memory_space<vmem>>, vector<16x128xf32>,
    %c0_i32_15 = arith.constant 0 : i32
    %20 = arith.cmpi eq, %arg1, %c0_i32_15 : i32
    %21 = arith.extui %20 : i1 to i32
    %c0_i32_16 = arith.constant 0 : i32
    %22 = arith.cmpi ne, %21, %c0_i32_16 : i32
    scf.if %22 {
      %c0_17 = arith.constant 0 : index
      %c0_18 = arith.constant 0 : index
      %23 = vector.load %arg9[%c0_17, %c0_18] : memref<16x128xf32, #tpu.memory_space<vmem>>, vector<16x128xf32>
      %c0_19 = arith.constant 0 : index
      %c0_20 = arith.constant 0 : index
      %24 = vector.load %arg7[%c0_19, %c0_20] : memref<16x128xf32, #tpu.memory_space<vmem>>, vector<16x128xf32>
      tpu.vector_store %arg7[%c0_19, %c0_20], %23 {strides = array<i32>} : memref<16x128xf32, #tpu.memory_space<vmem>>, vector<16x128xf32>,
    } else {
    }
    return
  }
  func.func @transform_0(%arg0: i32, %arg1: i32) -> (i32, i32) {
    %c0_i32 = arith.constant 0 : i32
    %c0_i32_0 = arith.constant 0 : i32
    return %arg0, %c0_i32 : i32, i32
  }
  func.func @transform_1(%arg0: i32, %arg1: i32) -> (i32, i32) {
    %c0_i32 = arith.constant 0 : i32
    %c0_i32_0 = arith.constant 0 : i32
    %c0_i32_1 = arith.constant 0 : i32
    return %c0_i32, %c0_i32_0 : i32, i32
  }
  func.func @transform_2(%arg0: i32, %arg1: i32) -> (i32, i32) {
    %c0_i32 = arith.constant 0 : i32
    %c0_i32_0 = arith.constant 0 : i32
    return %c0_i32, %arg1 : i32, i32
  }
  func.func @transform_3(%arg0: i32, %arg1: i32) -> (i32, i32) {
    %c0_i32 = arith.constant 0 : i32
    %c0_i32_0 = arith.constant 0 : i32
    return %c0_i32, %arg1 : i32, i32
  }
  func.func @transform_4(%arg0: i32, %arg1: i32) -> (i32, i32) {
    %c0_i32 = arith.constant 0 : i32
    %c0_i32_0 = arith.constant 0 : i32
    return %arg1, %c0_i32 : i32, i32
  }
  func.func @transform_5(%arg0: i32, %arg1: i32) -> (i32, i32) {
    %c0_i32 = arith.constant 0 : i32
    %c0_i32_0 = arith.constant 0 : i32
    return %arg0, %c0_i32 : i32, i32
  }
}

</mosaic_0001>

<llo_original>
// kernel: tpu_custom_call.1
$region0: #{tpu_custom_call.1}
  #allocation0 [shape = 'u32[]', space=smem, size = 0x4, offset = 0x4, fixed_abs, tag = 'smem constant byte address 0x4 - core index']
  #allocation1 [shape = 'u32[144,128]{1,0:T(1,128)}', space=vmem, size = 0x12000, scoped, tag = 'internal scratch']
  #allocation2 [shape = 'f32[16,128]{1,0:T(8,128)}', space=vmem, size = 0x2000, scoped, tag = 'scratch operand']
  #allocation3 [shape = 'f32[16,128]{1,0:T(8,128)}', space=vmem, size = 0x2000, scoped, tag = 'scratch operand']
  %s0 = inlined_call_operand.hbm [shape: f32[16,128], index: 0, kind: input, shape index: {}]
  %s1 = inlined_call_operand.vmem [shape: f32[1,128], index: 1, kind: input, shape index: {}]
  %s2 = inlined_call_operand.hbm [shape: f32[128,128], index: 2, kind: input, shape index: {}]
  %s3 = inlined_call_operand.hbm [shape: f32[128,128], index: 3, kind: input, shape index: {}]
  %s4 = inlined_call_operand.hbm [shape: f32[128,128], index: 4, kind: input, shape index: {}]
  %s5 = inlined_call_operand.hbm [shape: f32[16,128], index: 5, kind: output, shape index: {}]
  %s6 = sld [smem:[#allocation0]]
  $region54: #{tpu_custom_call.1} parent=0
    _
  %s8 = ssub.s32 1, %s6
  %s9 = scalar_select 0, %s8, %s6
  $region1: #{tpu_custom_call.1} parent=0
    #allocation4 [shape = 'u8[8192]{0}', space=vmem, size = 0x2000, scoped, tag = 'input window, operand 0, single buffered']
    #allocation5 [shape = 's32[1]{0}', space=sflag, size = 0x4, scoped, tag = 'scoped memory for tpu_custom_call.1']
    #allocation6 [shape = 's32[1]{0}', space=sflag, size = 0x4, scoped, tag = 'scoped memory for tpu_custom_call.1']
    #allocation7 [shape = 'u8[65536]{0}', space=vmem, size = 0x10000, scoped, tag = 'input window, operand 2, single buffered']
    #allocation8 [shape = 's32[1]{0}', space=sflag, size = 0x4, scoped, tag = 'scoped memory for tpu_custom_call.1']
    #allocation9 [shape = 'u8[65536]{0}', space=vmem, size = 0x10000, scoped, tag = 'input window, operand 3, single buffered']
    #allocation10 [shape = 'u8[65536]{0}', space=vmem, size = 0x10000, scoped, tag = 'input window, operand 4, single buffered']
    #allocation11 [shape = 's32[1]{0}', space=sflag, size = 0x4, scoped, tag = 'scoped memory for tpu_custom_call.1']
    #allocation12 [shape = 'u8[8192]{0}', space=vmem, size = 0x2000, scoped, tag = 'output window, operand 0, single buffered']
    %10 = vsyncpa [#allocation5], 0
    %11 = vsyncpa [#allocation8], 0
    %12 = vsyncpa [#allocation11], 0
    %13 = vsyncpa [#allocation6], 0
    // Predicated region
    $region2: #{tpu_custom_call.1} parent=1 // pred_check
      _
    $region3: #{tpu_custom_call.1} parent=1 // pred_check_branch
      %15 = sbr.rel (0) target = $region5
    $region4: #{tpu_custom_call.1} parent=1 // pred_region
      %s17 = ssub.s32 256, 256
      %18 = vsyncadd [#allocation5], %s17
      %s19 = sshll.u32 [#allocation4], 4
      %s20 = int_to_ptr.vmem [resolvable:$true] %s19
      %25 = dma.hbm_to_vmem [thread:$0]  %s0, 256, %s20, [#allocation5], 128, 128, 8
    $region5: #{tpu_custom_call.1} parent=1 // pred_fallthru
      _
    // Predicated region
    $region6: #{tpu_custom_call.1} parent=1 // pred_check
      _
    $region7: #{tpu_custom_call.1} parent=1 // pred_check_branch
      %27 = sbr.rel (0) target = $region9
    $region8: #{tpu_custom_call.1} parent=1 // pred_region
      _
    $region9: #{tpu_custom_call.1} parent=1 // pred_fallthru
      _
    // Predicated region
    $region10: #{tpu_custom_call.1} parent=1 // pred_check
      _
    $region11: #{tpu_custom_call.1} parent=1 // pred_check_branch
      %29 = sbr.rel (0) target = $region13
    $region12: #{tpu_custom_call.1} parent=1 // pred_region
      %s31 = ssub.s32 2048, 2048
      %32 = vsyncadd [#allocation8], %s31
      %s33 = sshll.u32 [#allocation7], 4
      %s34 = int_to_ptr.vmem [resolvable:$true] %s33
      %39 = dma.hbm_to_vmem [thread:$0]  %s2, 2048, %s34, [#allocation8], 128, 128, 8
    $region13: #{tpu_custom_call.1} parent=1 // pred_fallthru
      _
    // Predicated region
    $region14: #{tpu_custom_call.1} parent=1 // pred_check
      _
    $region15: #{tpu_custom_call.1} parent=1 // pred_check_branch
      %41 = sbr.rel (0) target = $region17
    $region16: #{tpu_custom_call.1} parent=1 // pred_region
      %s43 = ssub.s32 2048, 2048
      %44 = vsyncadd [#allocation8], %s43
      %s45 = sshll.u32 [#allocation9], 4
      %s46 = int_to_ptr.vmem [resolvable:$true] %s45
      %51 = dma.hbm_to_vmem [thread:$0]  %s3, 2048, %s46, [#allocation8], 128, 128, 8
    $region17: #{tpu_custom_call.1} parent=1 // pred_fallthru
      _
    // Predicated region
    $region18: #{tpu_custom_call.1} parent=1 // pred_check
      _
    $region19: #{tpu_custom_call.1} parent=1 // pred_check_branch
      %53 = sbr.rel (0) target = $region21
    $region20: #{tpu_custom_call.1} parent=1 // pred_region
      %s55 = ssub.s32 2048, 2048
      %56 = vsyncadd [#allocation11], %s55
      %s57 = sshll.u32 [#allocation10], 4
      %s58 = int_to_ptr.vmem [resolvable:$true] %s57
      %63 = dma.hbm_to_vmem [thread:$0]  %s4, 2048, %s58, [#allocation11], 128, 128, 8
    $region21: #{tpu_custom_call.1} parent=1 // pred_fallthru
      _
    // Predicated region
    $region22: #{tpu_custom_call.1} parent=1 // pred_check
      _
    $region23: #{tpu_custom_call.1} parent=1 // pred_check_branch
      %65 = sbr.rel (0) target = $region25
    $region24: #{tpu_custom_call.1} parent=1 // pred_region
      %66 = dma.done [#allocation5], 256
    $region25: #{tpu_custom_call.1} parent=1 // pred_fallthru
      _
    // Predicated region
    $region26: #{tpu_custom_call.1} parent=1 // pred_check
      _
    $region27: #{tpu_custom_call.1} parent=1 // pred_check_branch
      %68 = sbr.rel (0) target = $region29
    $region28: #{tpu_custom_call.1} parent=1 // pred_region
      %69 = dma.done [#allocation8], 2048
    $region29: #{tpu_custom_call.1} parent=1 // pred_fallthru
      _
    // Predicated region
    $region30: #{tpu_custom_call.1} parent=1 // pred_check
      _
    $region31: #{tpu_custom_call.1} parent=1 // pred_check_branch
      %71 = sbr.rel (0) target = $region33
    $region32: #{tpu_custom_call.1} parent=1 // pred_region
      %72 = dma.done [#allocation8], 2048
    $region33: #{tpu_custom_call.1} parent=1 // pred_fallthru
      _
    // Predicated region
    $region34: #{tpu_custom_call.1} parent=1 // pred_check
      _
    $region35: #{tpu_custom_call.1} parent=1 // pred_check_branch
      %74 = sbr.rel (0) target = $region37
    $region36: #{tpu_custom_call.1} parent=1 // pred_region
      %75 = dma.done [#allocation11], 2048
    $region37: #{tpu_custom_call.1} parent=1 // pred_fallthru
      _
    %p76 = scmp.eq.s32.totalorder 0, 0
    // Predicated region
    $region38: #{tpu_custom_call.1} parent=1 // pred_check
      %p77 = pneg %p76
    $region39: #{tpu_custom_call.1} parent=1 // pred_check_branch
      %79 = sbr.rel (%p77) target = $region41
    $region40: #{tpu_custom_call.1} parent=1 // pred_region
      %v80 = vld [vmem:[#allocation4] sm:$0xff]
      %v81 = vld [vmem:[#allocation4 + $0x8] sm:$0xff]
      %v82 = vmul.f32 %v80, %v80
      %v83 = vmul.f32 %v81, %v81
      %84 = vadd.xlane.f32.xlu0 %v82
      %v85 = vpop.xlane.xlu0 %84
      %86 = vadd.xlane.f32.xlu0 %v83
      %v87 = vpop.xlane.xlu0 %86
      %v88 = vmul.f32 %v85, 0.03125
      %v89 = vmul.f32 %v87, 0.03125
      %v90 = vadd.f32 %v88, 1e-06
      %v91 = vadd.f32 %v89, 1e-06
      %v92 = vrsqrt.pop %v90
      %v93 = vrsqrt.pop %v91
      %v94 = vmul.f32 %v80, %v92
      %v95 = vmul.f32 %v81, %v93
      %v96 = vld [vmem:[%s1] sm:$0x1]
      %v98 = vlaneseq
      %v99 = vshrl.u32 %v98, 7
      %v100 = vsub.s32 0, %v99
      %v101 = vrot.slane %v96, %v100
      %v103 = vmul.f32 %v94, %v101
      %v104 = vmul.f32 %v95, %v101
      %105 = vst [vmem:[#allocation2] sm:$0xff] %v103
      %106 = vst [vmem:[#allocation2 + $0x8] sm:$0xff] %v104
      %107 = vst [vmem:[#allocation3] sm:$0xff] 0.0
      %108 = vst [vmem:[#allocation3 + $0x8] sm:$0xff] 0.0
    $region41: #{tpu_custom_call.1} parent=1 // pred_fallthru
      _
    %v109 = vld [vmem:[#allocation2] sm:$0xff]
    %v110 = vld [vmem:[#allocation2 + $0x8] sm:$0xff]
    %v111 = vld [vmem:[#allocation7] sm:$0xff]
    %v112 = vld [vmem:[#allocation7 + $0x8] sm:$0xff]
    %v113 = vld [vmem:[#allocation7 + $0x10] sm:$0xff]
    %v114 = vld [vmem:[#allocation7 + $0x18] sm:$0xff]
    %v115 = vld [vmem:[#allocation7 + $0x20] sm:$0xff]
    %v116 = vld [vmem:[#allocation7 + $0x28] sm:$0xff]
    %v117 = vld [vmem:[#allocation7 + $0x30] sm:$0xff]
    %v118 = vld [vmem:[#allocation7 + $0x38] sm:$0xff]
    %v119 = vld [vmem:[#allocation7 + $0x40] sm:$0xff]
    %v120 = vld [vmem:[#allocation7 + $0x48] sm:$0xff]
    %v121 = vld [vmem:[#allocation7 + $0x50] sm:$0xff]
    %v122 = vld [vmem:[#allocation7 + $0x58] sm:$0xff]
    %v123 = vld [vmem:[#allocation7 + $0x60] sm:$0xff]
    %v124 = vld [vmem:[#allocation7 + $0x68] sm:$0xff]
    %v125 = vld [vmem:[#allocation7 + $0x70] sm:$0xff]
    %v126 = vld [vmem:[#allocation7 + $0x78] sm:$0xff]
    %127 = vmatprep.subr.mxu0 0.0
    %128 = vmatpush1.msra.mxu0 %v126
    %129 = vmatprep.subr.mxu0 0.0
    %130 = vmatpush1.msra.mxu0 %v125
    %131 = vmatprep.subr.mxu0 0.0
    %132 = vmatpush1.msra.mxu0 %v124
    %133 = vmatprep.subr.mxu0 0.0
    %134 = vmatpush1.msra.mxu0 %v123
    %135 = vmatprep.subr.mxu0 0.0
    %136 = vmatpush1.msra.mxu0 %v122
    %137 = vmatprep.subr.mxu0 0.0
    %138 = vmatpush1.msra.mxu0 %v121
    %139 = vmatprep.subr.mxu0 0.0
    %140 = vmatpush1.msra.mxu0 %v120
    %141 = vmatprep.subr.mxu0 0.0
    %142 = vmatpush1.msra.mxu0 %v119
    %143 = vmatprep.subr.mxu0 0.0
    %144 = vmatpush1.msra.mxu0 %v118
    %145 = vmatprep.subr.mxu0 0.0
    %146 = vmatpush1.msra.mxu0 %v117
    %147 = vmatprep.subr.mxu0 0.0
    %148 = vmatpush1.msra.mxu0 %v116
    %149 = vmatprep.subr.mxu0 0.0
    %150 = vmatpush1.msra.mxu0 %v115
    %151 = vmatprep.subr.mxu0 0.0
    %152 = vmatpush1.msra.mxu0 %v114
    %153 = vmatprep.subr.mxu0 0.0
    %154 = vmatpush1.msra.mxu0 %v113
    %155 = vmatprep.subr.mxu0 0.0
    %156 = vmatpush1.msra.mxu0 %v112
    %157 = vmatprep.subr.mxu0 0.0
    %158 = vmatpush1.msra.mxu0 %v111
    %159 = vmatprep.subr.mxu0 0.0
    %160 = vmatpush2.msra.mxu0 0.0
    %161 = vmatprep.subr.mxu0 0.0
    %162 = vmatpush2.msra.mxu0 0.0
    %163 = vmatprep.subr.mxu0 0.0
    %164 = vmatpush2.msra.mxu0 0.0
    %165 = vmatprep.subr.mxu0 0.0
    %166 = vmatpush2.msra.mxu0 0.0
    %167 = vmatprep.subr.mxu0 0.0
    %168 = vmatpush2.msra.mxu0 0.0
    %169 = vmatprep.subr.mxu0 0.0
    %170 = vmatpush2.msra.mxu0 0.0
    %171 = vmatprep.subr.mxu0 0.0
    %172 = vmatpush2.msra.mxu0 0.0
    %173 = vmatprep.subr.mxu0 0.0
    %174 = vmatpush2.msra.mxu0 0.0
    %175 = vmatprep.subr.mxu0 0.0
    %176 = vmatpush2.msra.mxu0 0.0
    %177 = vmatprep.subr.mxu0 0.0
    %178 = vmatpush2.msra.mxu0 0.0
    %179 = vmatprep.subr.mxu0 0.0
    %180 = vmatpush2.msra.mxu0 0.0
    %181 = vmatprep.subr.mxu0 0.0
    %182 = vmatpush2.msra.mxu0 0.0
    %183 = vmatprep.subr.mxu0 0.0
    %184 = vmatpush2.msra.mxu0 0.0
    %185 = vmatprep.subr.mxu0 0.0
    %186 = vmatpush2.msra.mxu0 0.0
    %187 = vmatprep.subr.mxu0 0.0
    %188 = vmatpush2.msra.mxu0 0.0
    %189 = vmatprep.subr.mxu0 0.0
    %190 = vmatpush2.msra.mxu0 0.0
    %191 = vmatprep.mubr.f32.mxu0 0.0
    %192 = vmatmul.mubr.f32.gmra.mxu0 %v109
    %v193 = vpop.f32.mrf.mxu0
    %v194 = vadd.f32 0.0, %v193
    %v195 = vpop.f32.mrf.mxu0
    %196 = vmatprep.mubr.f32.mxu0 0.0
    %197 = vmatmul.mubr.f32.gmra.mxu0 %v110
    %v198 = vpop.f32.mrf.mxu0
    %v199 = vadd.f32 0.0, %v198
    %v200 = vpop.f32.mrf.mxu0
    %201 = vdwg.mxu0
    %v202 = vld [vmem:[#allocation9] sm:$0xff]
    %v203 = vld [vmem:[#allocation9 + $0x8] sm:$0xff]
    %v204 = vld [vmem:[#allocation9 + $0x10] sm:$0xff]
    %v205 = vld [vmem:[#allocation9 + $0x18] sm:$0xff]
    %v206 = vld [vmem:[#allocation9 + $0x20] sm:$0xff]
    %v207 = vld [vmem:[#allocation9 + $0x28] sm:$0xff]
    %v208 = vld [vmem:[#allocation9 + $0x30] sm:$0xff]
    %v209 = vld [vmem:[#allocation9 + $0x38] sm:$0xff]
    %v210 = vld [vmem:[#allocation9 + $0x40] sm:$0xff]
    %v211 = vld [vmem:[#allocation9 + $0x48] sm:$0xff]
    %v212 = vld [vmem:[#allocation9 + $0x50] sm:$0xff]
    %v213 = vld [vmem:[#allocation9 + $0x58] sm:$0xff]
    %v214 = vld [vmem:[#allocation9 + $0x60] sm:$0xff]
    %v215 = vld [vmem:[#allocation9 + $0x68] sm:$0xff]
    %v216 = vld [vmem:[#allocation9 + $0x70] sm:$0xff]
    %v217 = vld [vmem:[#allocation9 + $0x78] sm:$0xff]
    %218 = vmatprep.subr.mxu0 0.0
    %219 = vmatpush1.msra.mxu0 %v217
    %220 = vmatprep.subr.mxu0 0.0
    %221 = vmatpush1.msra.mxu0 %v216
    %222 = vmatprep.subr.mxu0 0.0
    %223 = vmatpush1.msra.mxu0 %v215
    %224 = vmatprep.subr.mxu0 0.0
    %225 = vmatpush1.msra.mxu0 %v214
    %226 = vmatprep.subr.mxu0 0.0
    %227 = vmatpush1.msra.mxu0 %v213
    %228 = vmatprep.subr.mxu0 0.0
    %229 = vmatpush1.msra.mxu0 %v212
    %230 = vmatprep.subr.mxu0 0.0
    %231 = vmatpush1.msra.mxu0 %v211
    %232 = vmatprep.subr.mxu0 0.0
    %233 = vmatpush1.msra.mxu0 %v210
    %234 = vmatprep.subr.mxu0 0.0
    %235 = vmatpush1.msra.mxu0 %v209
    %236 = vmatprep.subr.mxu0 0.0
    %237 = vmatpush1.msra.mxu0 %v208
    %238 = vmatprep.subr.mxu0 0.0
    %239 = vmatpush1.msra.mxu0 %v207
    %240 = vmatprep.subr.mxu0 0.0
    %241 = vmatpush1.msra.mxu0 %v206
    %242 = vmatprep.subr.mxu0 0.0
    %243 = vmatpush1.msra.mxu0 %v205
    %244 = vmatprep.subr.mxu0 0.0
    %245 = vmatpush1.msra.mxu0 %v204
    %246 = vmatprep.subr.mxu0 0.0
    %247 = vmatpush1.msra.mxu0 %v203
    %248 = vmatprep.subr.mxu0 0.0
    %249 = vmatpush1.msra.mxu0 %v202
    %250 = vmatprep.subr.mxu0 0.0
    %251 = vmatpush2.msra.mxu0 0.0
    %252 = vmatprep.subr.mxu0 0.0
    %253 = vmatpush2.msra.mxu0 0.0
    %254 = vmatprep.subr.mxu0 0.0
    %255 = vmatpush2.msra.mxu0 0.0
    %256 = vmatprep.subr.mxu0 0.0
    %257 = vmatpush2.msra.mxu0 0.0
    %258 = vmatprep.subr.mxu0 0.0
    %259 = vmatpush2.msra.mxu0 0.0
    %260 = vmatprep.subr.mxu0 0.0
    %261 = vmatpush2.msra.mxu0 0.0
    %262 = vmatprep.subr.mxu0 0.0
    %263 = vmatpush2.msra.mxu0 0.0
    %264 = vmatprep.subr.mxu0 0.0
    %265 = vmatpush2.msra.mxu0 0.0
    %266 = vmatprep.subr.mxu0 0.0
    %267 = vmatpush2.msra.mxu0 0.0
    %268 = vmatprep.subr.mxu0 0.0
    %269 = vmatpush2.msra.mxu0 0.0
    %270 = vmatprep.subr.mxu0 0.0
    %271 = vmatpush2.msra.mxu0 0.0
    %272 = vmatprep.subr.mxu0 0.0
    %273 = vmatpush2.msra.mxu0 0.0
    %274 = vmatprep.subr.mxu0 0.0
    %275 = vmatpush2.msra.mxu0 0.0
    %276 = vmatprep.subr.mxu0 0.0
    %277 = vmatpush2.msra.mxu0 0.0
    %278 = vmatprep.subr.mxu0 0.0
    %279 = vmatpush2.msra.mxu0 0.0
    %280 = vmatprep.subr.mxu0 0.0
    %281 = vmatpush2.msra.mxu0 0.0
    %282 = vmatprep.mubr.f32.mxu0 0.0
    %283 = vmatmul.mubr.f32.gmra.mxu0 %v109
    %v284 = vpop.f32.mrf.mxu0
    %v285 = vadd.f32 0.0, %v284
    %v286 = vpop.f32.mrf.mxu0
    %287 = vmatprep.mubr.f32.mxu0 0.0
    %288 = vmatmul.mubr.f32.gmra.mxu0 %v110
    %v289 = vpop.f32.mrf.mxu0
    %v290 = vadd.f32 0.0, %v289
    %v291 = vpop.f32.mrf.mxu0
    %292 = vdwg.mxu0
    %v293 = vxor.u32 %v194, 2147483648
    %v294 = vxor.u32 %v199, 2147483648
    %v295 = vmul.f32 %v293, 1.442695
    %v296 = vpow.pop %v295
    %v297 = vmul.f32 %v294, 1.442695
    %v298 = vpow.pop %v297
    %v299 = vadd.f32 %v296, 1.0
    %v300 = vadd.f32 %v298, 1.0
    %v301 = vrcp.pop %v299
    %v302 = vmul.f32 1.0, %v301
    %v303 = vrcp.pop %v300
    %v304 = vmul.f32 1.0, %v303
    %v305 = vmul.f32 %v194, %v302
    %v306 = vmul.f32 %v199, %v304
    %v307 = vmul.f32 %v305, %v285
    %v308 = vmul.f32 %v306, %v290
    %v309 = vld [vmem:[#allocation3] sm:$0xff]
    %v310 = vld [vmem:[#allocation3 + $0x8] sm:$0xff]
    %v311 = vld [vmem:[#allocation10] sm:$0xff]
    %v312 = vld [vmem:[#allocation10 + $0x8] sm:$0xff]
    %v313 = vld [vmem:[#allocation10 + $0x10] sm:$0xff]
    %v314 = vld [vmem:[#allocation10 + $0x18] sm:$0xff]
    %v315 = vld [vmem:[#allocation10 + $0x20] sm:$0xff]
    %v316 = vld [vmem:[#allocation10 + $0x28] sm:$0xff]
    %v317 = vld [vmem:[#allocation10 + $0x30] sm:$0xff]
    %v318 = vld [vmem:[#allocation10 + $0x38] sm:$0xff]
    %v319 = vld [vmem:[#allocation10 + $0x40] sm:$0xff]
    %v320 = vld [vmem:[#allocation10 + $0x48] sm:$0xff]
    %v321 = vld [vmem:[#allocation10 + $0x50] sm:$0xff]
    %v322 = vld [vmem:[#allocation10 + $0x58] sm:$0xff]
    %v323 = vld [vmem:[#allocation10 + $0x60] sm:$0xff]
    %v324 = vld [vmem:[#allocation10 + $0x68] sm:$0xff]
    %v325 = vld [vmem:[#allocation10 + $0x70] sm:$0xff]
    %v326 = vld [vmem:[#allocation10 + $0x78] sm:$0xff]
    %327 = vmatprep.subr.mxu0 0.0
    %328 = vmatpush1.msra.mxu0 %v326
    %329 = vmatprep.subr.mxu0 0.0
    %330 = vmatpush1.msra.mxu0 %v325
    %331 = vmatprep.subr.mxu0 0.0
    %332 = vmatpush1.msra.mxu0 %v324
    %333 = vmatprep.subr.mxu0 0.0
    %334 = vmatpush1.msra.mxu0 %v323
    %335 = vmatprep.subr.mxu0 0.0
    %336 = vmatpush1.msra.mxu0 %v322
    %337 = vmatprep.subr.mxu0 0.0
    %338 = vmatpush1.msra.mxu0 %v321
    %339 = vmatprep.subr.mxu0 0.0
    %340 = vmatpush1.msra.mxu0 %v320
    %341 = vmatprep.subr.mxu0 0.0
    %342 = vmatpush1.msra.mxu0 %v319
    %343 = vmatprep.subr.mxu0 0.0
    %344 = vmatpush1.msra.mxu0 %v318
    %345 = vmatprep.subr.mxu0 0.0
    %346 = vmatpush1.msra.mxu0 %v317
    %347 = vmatprep.subr.mxu0 0.0
    %348 = vmatpush1.msra.mxu0 %v316
    %349 = vmatprep.subr.mxu0 0.0
    %350 = vmatpush1.msra.mxu0 %v315
    %351 = vmatprep.subr.mxu0 0.0
    %352 = vmatpush1.msra.mxu0 %v314
    %353 = vmatprep.subr.mxu0 0.0
    %354 = vmatpush1.msra.mxu0 %v313
    %355 = vmatprep.subr.mxu0 0.0
    %356 = vmatpush1.msra.mxu0 %v312
    %357 = vmatprep.subr.mxu0 0.0
    %358 = vmatpush1.msra.mxu0 %v311
    %359 = vmatprep.subr.mxu0 0.0
    %360 = vmatpush2.msra.mxu0 0.0
    %361 = vmatprep.subr.mxu0 0.0
    %362 = vmatpush2.msra.mxu0 0.0
    %363 = vmatprep.subr.mxu0 0.0
    %364 = vmatpush2.msra.mxu0 0.0
    %365 = vmatprep.subr.mxu0 0.0
    %366 = vmatpush2.msra.mxu0 0.0
    %367 = vmatprep.subr.mxu0 0.0
    %368 = vmatpush2.msra.mxu0 0.0
    %369 = vmatprep.subr.mxu0 0.0
    %370 = vmatpush2.msra.mxu0 0.0
    %371 = vmatprep.subr.mxu0 0.0
    %372 = vmatpush2.msra.mxu0 0.0
    %373 = vmatprep.subr.mxu0 0.0
    %374 = vmatpush2.msra.mxu0 0.0
    %375 = vmatprep.subr.mxu0 0.0
    %376 = vmatpush2.msra.mxu0 0.0
    %377 = vmatprep.subr.mxu0 0.0
    %378 = vmatpush2.msra.mxu0 0.0
    %379 = vmatprep.subr.mxu0 0.0
    %380 = vmatpush2.msra.mxu0 0.0
    %381 = vmatprep.subr.mxu0 0.0
    %382 = vmatpush2.msra.mxu0 0.0
    %383 = vmatprep.subr.mxu0 0.0
    %384 = vmatpush2.msra.mxu0 0.0
    %385 = vmatprep.subr.mxu0 0.0
    %386 = vmatpush2.msra.mxu0 0.0
    %387 = vmatprep.subr.mxu0 0.0
    %388 = vmatpush2.msra.mxu0 0.0
    %389 = vmatprep.subr.mxu0 0.0
    %390 = vmatpush2.msra.mxu0 0.0
    %391 = vmatprep.mubr.f32.mxu0 0.0
    %392 = vmatmul.mubr.f32.gmra.mxu0 %v307
    %v393 = vpop.f32.mrf.mxu0
    %v394 = vadd.f32 0.0, %v393
    %v395 = vpop.f32.mrf.mxu0
    %396 = vmatprep.mubr.f32.mxu0 0.0
    %397 = vmatmul.mubr.f32.gmra.mxu0 %v308
    %v398 = vpop.f32.mrf.mxu0
    %v399 = vadd.f32 0.0, %v398
    %v400 = vpop.f32.mrf.mxu0
    %401 = vdwg.mxu0
    %v402 = vadd.f32 %v309, %v394
    %v403 = vadd.f32 %v310, %v399
    %404 = vst [vmem:[#allocation3] sm:$0xff] %v402
    %405 = vst [vmem:[#allocation3 + $0x8] sm:$0xff] %v403
    // Predicated region
    $region42: #{tpu_custom_call.1} parent=1 // pred_check
      %p406 = pneg %p76
    $region43: #{tpu_custom_call.1} parent=1 // pred_check_branch
      %408 = sbr.rel (%p406) target = $region45
    $region44: #{tpu_custom_call.1} parent=1 // pred_region
      %v409 = vld [vmem:[#allocation3] sm:$0xff]
      %v410 = vld [vmem:[#allocation3 + $0x8] sm:$0xff]
      %411 = vst [vmem:[#allocation12] sm:$0xff] %v409
      %412 = vst [vmem:[#allocation12 + $0x8] sm:$0xff] %v410
    $region45: #{tpu_custom_call.1} parent=1 // pred_fallthru
      _
    // Predicated region
    $region46: #{tpu_custom_call.1} parent=1 // pred_check
      _
    $region47: #{tpu_custom_call.1} parent=1 // pred_check_branch
      %414 = sbr.rel (0) target = $region49
    $region48: #{tpu_custom_call.1} parent=1 // pred_region
      %s416 = ssub.s32 256, 256
      %417 = vsyncadd [#allocation6], %s416
      %s418 = sshll.u32 [#allocation12], 4
      %s419 = int_to_ptr.vmem [resolvable:$true] %s418
      %424 = dma.vmem_to_hbm [thread:$0]  %s419, 256, %s5, [#allocation6], 128, 128, 8
    $region49: #{tpu_custom_call.1} parent=1 // pred_fallthru
      _
    // Predicated region
    $region50: #{tpu_custom_call.1} parent=1 // pred_check
      _
    $region51: #{tpu_custom_call.1} parent=1 // pred_check_branch
      %426 = sbr.rel (0) target = $region53
    $region52: #{tpu_custom_call.1} parent=1 // pred_region
      %427 = dma.done [#allocation6], 256
    $region53: #{tpu_custom_call.1} parent=1 // pred_fallthru
      _
    %428 = vsyncpa [#allocation5], 1
    %429 = vsyncpa [#allocation8], 1
    %430 = vsyncpa [#allocation11], 1
    %431 = vsyncpa [#allocation6], 1

</llo_original>
